<compile_context>
chip_gen: v5e
topology: v5e:2x2
jax: 0.10.0
libtpu: 0.0.40
codegen_flags: <defaults>
</compile_context>

<pallas_src>
import jax
import jax.numpy as jnp
import numpy as np
from jax import lax
from jax.experimental import pallas as pl
from jax.experimental.pallas import tpu as pltpu

# Module hyper-parameters (only logit_fmt='sigmoid' affects deploy-mode math).
IOU_THRESHOLD = 0.7
SCORE_THRESHOLD = 0.01
KEEP_TOPK = 300


def _round_up(x: int, m: int) -> int:
    return (x + m - 1) // m * m


def _det_postproc_kernel(sizes_ref, logits_ref, boxes_ref,
                         labels_ref, boxes_out_ref, scores_ref):
    """One grid step == one image.

    sizes_ref     : SMEM (B, 2) f32      -- (w, h), read as scalars via program_id
    logits_ref    : VMEM (1, Qp, Cp) f32 -- classes on lanes
    boxes_ref     : VMEM (1, 4, Qp) f32  -- [cx, cy, w, h] planes, queries on lanes
    labels_ref    : VMEM (1, 1, Qp) i32
    boxes_out_ref : VMEM (1, 4, Qp) f32  -- [x1, y1, x2, y2] planes, scaled
    scores_ref    : VMEM (1, 1, Qp) f32
    """
    b = pl.program_id(0)
    sw = sizes_ref[b, 0]      # scalar width
    sh = sizes_ref[b, 1]      # scalar height

    # ---- boxes: cxcywh -> xyxy + scale, pure VPU elementwise (no MXU) ----
    bx = boxes_ref[0]                     # (4, Qp)
    cx = bx[0:1, :]
    cy = bx[1:2, :]
    hw = 0.5 * bx[2:3, :]
    hh = 0.5 * bx[3:4, :]
    x1 = (cx - hw) * sw
    y1 = (cy - hh) * sh
    x2 = (cx + hw) * sw
    y2 = (cy + hh) * sh
    boxes_out_ref[0] = jnp.concatenate([x1, y1, x2, y2], axis=0)   # (4, Qp)

    # ---- logits: single class-max reduction reused for label and score ----
    logits = logits_ref[0]                                         # (Qp, Cp)
    vmax = jnp.max(logits, axis=-1, keepdims=True)                 # (Qp, 1)
    cls_idx = lax.broadcasted_iota(jnp.int32, logits.shape, 1)     # (Qp, Cp)
    # First-max-index tie-breaking (matches torch.max / jnp.argmax). Relies on
    # exact f32 equality against vmax taken from the same tensor -- keep f32.
    masked = jnp.where(logits == vmax, cls_idx, jnp.int32(logits.shape[-1]))
    labels_ref[0, 0, :] = jnp.min(masked, axis=-1).astype(jnp.int32)
    scores_ref[0, 0, :] = jax.nn.sigmoid(vmax[:, 0])


def det_nms_postprocess_deploy(pred_logits, pred_boxes, orig_target_sizes):
    """Deploy-mode forward: returns (pred_labels, pred_boxes_xyxy_scaled, pred_scores).

    pred_logits: (B, Q, C) f32, pred_boxes: (B, Q, 4) cxcywh f32,
    orig_target_sizes: (B, 2) = (w, h).
    NOTE: at tiny shapes the pure-JAX path fuses with upstream XLA and is at
    least as fast; keep the kernel for real deploy sizes (Q~300-900, C~80-91).
    """
    B, Q, C = pred_logits.shape
    Qp = _round_up(Q, 128)    # queries go to lanes of boxes/labels/scores
    Cp = _round_up(C, 128)    # classes go to lanes of logits

    # Pad classes (and padded query rows) with -inf so max/argmax are unchanged;
    # padded query rows are sliced off after the kernel.
    logits_p = jnp.pad(pred_logits.astype(jnp.float32),
                       ((0, 0), (0, Qp - Q), (0, Cp - C)),
                       constant_values=-jnp.inf)
    # Lane-dense box planes: (B, 4, Qp), queries on lanes.
    boxes_t = jnp.transpose(pred_boxes.astype(jnp.float32), (0, 2, 1))
    boxes_t = jnp.pad(boxes_t, ((0, 0), (0, 0), (0, Qp - Q)))
    sizes = orig_target_sizes.astype(jnp.float32)

    labels_p, boxes_p, scores_p = pl.pallas_call(
        _det_postproc_kernel,
        grid=(B,),
        out_shape=(
            jax.ShapeDtypeStruct((B, 1, Qp), jnp.int32),    # labels (lane-dense)
            jax.ShapeDtypeStruct((B, 4, Qp), jnp.float32),  # boxes xyxy planes
            jax.ShapeDtypeStruct((B, 1, Qp), jnp.float32),  # scores (lane-dense)
        ),
        in_specs=[
            pl.BlockSpec(memory_space=pltpu.MemorySpace.SMEM),   # (B,2) scalar sizes
            pl.BlockSpec((1, Qp, Cp), lambda b: (b, 0, 0)),      # logits, per image
            pl.BlockSpec((1, 4, Qp), lambda b: (b, 0, 0)),       # box planes, per image
        ],
        out_specs=(
            pl.BlockSpec((1, 1, Qp), lambda b: (b, 0, 0)),
            pl.BlockSpec((1, 4, Qp), lambda b: (b, 0, 0)),
            pl.BlockSpec((1, 1, Qp), lambda b: (b, 0, 0)),
        ),
        compiler_params=pltpu.CompilerParams(
            dimension_semantics=("parallel",)),   # megacore sharding over batch (v7x)
    )(sizes, logits_p, boxes_t)

    labels = labels_p[:, 0, :Q]                              # (B, Q) int32
    scores = scores_p[:, 0, :Q]                              # (B, Q) f32
    boxes = jnp.transpose(boxes_p[:, :, :Q], (0, 2, 1))      # (B, Q, 4) xyxy * scale
    return labels, boxes, scores


def _reference(pred_logits, pred_boxes, orig_target_sizes):
    """Pure-JAX reference mirroring the PyTorch deploy-mode forward."""
    cx, cy, w, h = (pred_boxes[..., 0], pred_boxes[..., 1],
                    pred_boxes[..., 2], pred_boxes[..., 3])
    xyxy = jnp.stack([cx - 0.5 * w, cy - 0.5 * h, cx + 0.5 * w, cy + 0.5 * h], axis=-1)
    scale = jnp.concatenate([orig_target_sizes, orig_target_sizes], axis=-1)[:, None, :]
    boxes = xyxy * scale
    labels = jnp.argmax(pred_logits, axis=-1).astype(jnp.int32)
    scores = jax.nn.sigmoid(jnp.max(pred_logits, axis=-1))
    return labels, boxes, scores


if __name__ == "__main__":
    B, Q, C = 2, 16, 32  # batch, num queries, num classes (toy shapes)
    key = jax.random.PRNGKey(0)
    k1, k2, k3 = jax.random.split(key, 3)

    pred_logits = jax.random.normal(k1, (B, Q, C), dtype=jnp.float32)
    pred_boxes = jax.random.uniform(k2, (B, Q, 4), dtype=jnp.float32,
                                    minval=0.05, maxval=0.95)        # cxcywh in [0,1]
    orig_target_sizes = jax.random.uniform(k3, (B, 2), dtype=jnp.float32,
                                           minval=400.0, maxval=800.0)  # (w, h)

    run = jax.jit(det_nms_postprocess_deploy)
    labels, boxes, scores = run(pred_logits, pred_boxes, orig_target_sizes)
    jax.block_until_ready((labels, boxes, scores))

    ref_labels, ref_boxes, ref_scores = _reference(pred_logits, pred_boxes, orig_target_sizes)
    np.testing.assert_array_equal(np.asarray(labels), np.asarray(ref_labels))
    np.testing.assert_allclose(np.asarray(boxes), np.asarray(ref_boxes), rtol=1e-5, atol=1e-3)
    np.testing.assert_allclose(np.asarray(scores), np.asarray(ref_scores), rtol=1e-5, atol=1e-6)

    print("KERNEL_OK")
</pallas_src>

<mosaic_0001>
module attributes {stable_mosaic.version = 11 : i64} {
  func.func @_det_postproc_kernel(%arg0: i32, %arg1: memref<2x2xf32, #tpu.memory_space<smem>>, %arg2: memref<1x128x128xf32, #tpu.memory_space<vmem>>, %arg3: memref<1x4x128xf32, #tpu.memory_space<vmem>>, %arg4: memref<1x1x128xi32, #tpu.memory_space<vmem>>, %arg5: memref<1x4x128xf32, #tpu.memory_space<vmem>>, %arg6: memref<1x1x128xf32, #tpu.memory_space<vmem>>) attributes {dimension_semantics = [#tpu.dimension_semantics<parallel>], iteration_bounds = array<i64: 2>, scalar_prefetch = 0 : i64, scratch_operands = 0 : i64, tpu.core_type = #tpu.core_type<tc>, window_params = [{transform_indices = @transform_0, window_bounds = array<i64: 2, 2>}, {transform_indices = @transform_1, window_bounds = array<i64: 1, 128, 128>}, {transform_indices = @transform_2, window_bounds = array<i64: 1, 4, 128>}, {transform_indices = @transform_3, window_bounds = array<i64: 1, 1, 128>}, {transform_indices = @transform_4, window_bounds = array<i64: 1, 4, 128>}, {transform_indices = @transform_5, window_bounds = array<i64: 1, 1, 128>}]} {
    %0 = arith.index_cast %arg0 : i32 to index
    %c0 = arith.constant 0 : index
    %1 = memref.load %arg1[%0, %c0] : memref<2x2xf32, #tpu.memory_space<smem>>
    %2 = arith.index_cast %arg0 : i32 to index
    %c1 = arith.constant 1 : index
    %3 = memref.load %arg1[%2, %c1] : memref<2x2xf32, #tpu.memory_space<smem>>
    %c0_0 = arith.constant 0 : index
    %c0_1 = arith.constant 0 : index
    %c0_2 = arith.constant 0 : index
    %4 = vector.load %arg3[%c0_0, %c0_1, %c0_2] : memref<1x4x128xf32, #tpu.memory_space<vmem>>, vector<1x4x128xf32>
    %5 = vector.shape_cast %4 : vector<1x4x128xf32> to vector<4x128xf32>
    %6 = vector.extract_strided_slice %5 {offsets = [0, 0], sizes = [1, 128], strides = [1, 1]} : vector<4x128xf32> to vector<1x128xf32>
    %7 = vector.extract_strided_slice %5 {offsets = [1, 0], sizes = [1, 128], strides = [1, 1]} : vector<4x128xf32> to vector<1x128xf32>
    %8 = vector.extract_strided_slice %5 {offsets = [2, 0], sizes = [1, 128], strides = [1, 1]} : vector<4x128xf32> to vector<1x128xf32>
    %cst = arith.constant 5.000000e-01 : f32
    %9 = vector.broadcast %cst : f32 to vector<1x128xf32>
    %10 = arith.mulf %9, %8 : vector<1x128xf32>
    %11 = vector.extract_strided_slice %5 {offsets = [3, 0], sizes = [1, 128], strides = [1, 1]} : vector<4x128xf32> to vector<1x128xf32>
    %cst_3 = arith.constant 5.000000e-01 : f32
    %12 = vector.broadcast %cst_3 : f32 to vector<1x128xf32>
    %13 = arith.mulf %12, %11 : vector<1x128xf32>
    %14 = arith.subf %6, %10 : vector<1x128xf32>
    %15 = vector.broadcast %1 : f32 to vector<1x128xf32>
    %16 = arith.mulf %14, %15 : vector<1x128xf32>
    %17 = arith.subf %7, %13 : vector<1x128xf32>
    %18 = vector.broadcast %3 : f32 to vector<1x128xf32>
    %19 = arith.mulf %17, %18 : vector<1x128xf32>
    %20 = arith.addf %6, %10 : vector<1x128xf32>
    %21 = vector.broadcast %1 : f32 to vector<1x128xf32>
    %22 = arith.mulf %20, %21 : vector<1x128xf32>
    %23 = arith.addf %7, %13 : vector<1x128xf32>
    %24 = vector.broadcast %3 : f32 to vector<1x128xf32>
    %25 = arith.mulf %23, %24 : vector<1x128xf32>
    %26 = tpu.concatenate %16, %19, %22, %25 in 0 : vector<1x128xf32>, vector<1x128xf32>, vector<1x128xf32>, vector<1x128xf32> -> vector<4x128xf32>
    %c0_4 = arith.constant 0 : index
    %c0_5 = arith.constant 0 : index
    %c0_6 = arith.constant 0 : index
    %27 = vector.load %arg5[%c0_4, %c0_5, %c0_6] : memref<1x4x128xf32, #tpu.memory_space<vmem>>, vector<1x4x128xf32>
    %28 = vector.shape_cast %27 : vector<1x4x128xf32> to vector<4x128xf32>
    %29 = vector.shape_cast %26 : vector<4x128xf32> to vector<1x4x128xf32>
    tpu.vector_store %arg5[%c0_4, %c0_5, %c0_6], %29 {strides = array<i32>} : memref<1x4x128xf32, #tpu.memory_space<vmem>>, vector<1x4x128xf32>,
    %c0_7 = arith.constant 0 : index
    %c0_8 = arith.constant 0 : index
    %c0_9 = arith.constant 0 : index
    %30 = vector.load %arg2[%c0_7, %c0_8, %c0_9] : memref<1x128x128xf32, #tpu.memory_space<vmem>>, vector<1x128x128xf32>
    %31 = vector.shape_cast %30 : vector<1x128x128xf32> to vector<128x128xf32>
    %cst_10 = arith.constant dense<0xFF800000> : vector<128xf32>
    %32 = vector.multi_reduction <maximumf>, %31, %cst_10 [1] : vector<128x128xf32> to vector<128xf32>
    %33 = vector.shape_cast %32 : vector<128xf32> to vector<128x1xf32>
    %34 = tpu.iota {dimensions = array<i32: 1>} : vector<128x128xi32>
    %35 = vector.broadcast %33 : vector<128x1xf32> to vector<128x128xf32>
    %36 = arith.cmpf oeq, %31, %35 : vector<128x128xf32>
    %c128_i32 = arith.constant 128 : i32
    %37 = vector.broadcast %c128_i32 : i32 to vector<128x128xi32>
    %38 = arith.select %36, %34, %37 : vector<128x128xi1>, vector<128x128xi32>
    %cst_11 = arith.constant dense<2147483647> : vector<128xi32>
    %39 = vector.multi_reduction <minsi>, %38, %cst_11 [1] : vector<128x128xi32> to vector<128xi32>
    %c0_12 = arith.constant 0 : index
    %c0_13 = arith.constant 0 : index
    %c0_14 = arith.constant 0 : index
    %40 = vector.load %arg4[%c0_12, %c0_13, %c0_14] : memref<1x1x128xi32, #tpu.memory_space<vmem>>, vector<1x1x128xi32>
    %41 = vector.shape_cast %40 : vector<1x1x128xi32> to vector<128xi32>
    %42 = vector.shape_cast %39 : vector<128xi32> to vector<1x1x128xi32>
    tpu.vector_store %arg4[%c0_12, %c0_13, %c0_14], %42 {strides = array<i32>} : memref<1x1x128xi32, #tpu.memory_space<vmem>>, vector<1x1x128xi32>,
    %43 = vector.shape_cast %33 : vector<128x1xf32> to vector<128xf32>
    %44 = arith.negf %43 : vector<128xf32>
    %45 = math.exp %44 : vector<128xf32>
    %cst_15 = arith.constant 1.000000e+00 : f32
    %46 = vector.broadcast %cst_15 : f32 to vector<128xf32>
    %47 = arith.addf %46, %45 : vector<128xf32>
    %48 = arith.divf %46, %47 : vector<128xf32>
    %c0_16 = arith.constant 0 : index
    %c0_17 = arith.constant 0 : index
    %c0_18 = arith.constant 0 : index
    %49 = vector.load %arg6[%c0_16, %c0_17, %c0_18] : memref<1x1x128xf32, #tpu.memory_space<vmem>>, vector<1x1x128xf32>
    %50 = vector.shape_cast %49 : vector<1x1x128xf32> to vector<128xf32>
    %51 = vector.shape_cast %48 : vector<128xf32> to vector<1x1x128xf32>
    tpu.vector_store %arg6[%c0_16, %c0_17, %c0_18], %51 {strides = array<i32>} : memref<1x1x128xf32, #tpu.memory_space<vmem>>, vector<1x1x128xf32>,
    return
  }
  func.func @transform_0(%arg0: i32) -> (i32, i32) {
    %c0_i32 = arith.constant 0 : i32
    %c0_i32_0 = arith.constant 0 : i32
    %c0_i32_1 = arith.constant 0 : i32
    return %c0_i32, %c0_i32_0 : i32, i32
  }
  func.func @transform_1(%arg0: i32) -> (i32, i32, i32) {
    %c0_i32 = arith.constant 0 : i32
    %c0_i32_0 = arith.constant 0 : i32
    %c0_i32_1 = arith.constant 0 : i32
    return %arg0, %c0_i32, %c0_i32_0 : i32, i32, i32
  }
  func.func @transform_2(%arg0: i32) -> (i32, i32, i32) {
    %c0_i32 = arith.constant 0 : i32
    %c0_i32_0 = arith.constant 0 : i32
    %c0_i32_1 = arith.constant 0 : i32
    return %arg0, %c0_i32, %c0_i32_0 : i32, i32, i32
  }
  func.func @transform_3(%arg0: i32) -> (i32, i32, i32) {
    %c0_i32 = arith.constant 0 : i32
    %c0_i32_0 = arith.constant 0 : i32
    %c0_i32_1 = arith.constant 0 : i32
    return %arg0, %c0_i32, %c0_i32_0 : i32, i32, i32
  }
  func.func @transform_4(%arg0: i32) -> (i32, i32, i32) {
    %c0_i32 = arith.constant 0 : i32
    %c0_i32_0 = arith.constant 0 : i32
    %c0_i32_1 = arith.constant 0 : i32
    return %arg0, %c0_i32, %c0_i32_0 : i32, i32, i32
  }
  func.func @transform_5(%arg0: i32) -> (i32, i32, i32) {
    %c0_i32 = arith.constant 0 : i32
    %c0_i32_0 = arith.constant 0 : i32
    %c0_i32_1 = arith.constant 0 : i32
    return %arg0, %c0_i32, %c0_i32_0 : i32, i32, i32
  }
}

</mosaic_0001>

<llo_original>
// kernel: det_nms_postprocess_deploy.1
$region0: #{det_nms_postprocess_deploy.1}
  #allocation0 [shape = 'u32[]', space=smem, size = 0x4, offset = 0x4, fixed_abs, tag = 'smem constant byte address 0x4 - core index']
  #allocation1 [shape = 'u32[72,128]{1,0:T(1,128)}', space=vmem, size = 0x9000, scoped, tag = 'internal scratch']
  %s0 = inlined_call_operand.vmem [shape: f32[2,2], index: 0, kind: input, shape index: {}]
  %s1 = inlined_call_operand.vmem [shape: f32[2,128,128], index: 1, kind: input, shape index: {}]
  %s2 = inlined_call_operand.vmem [shape: f32[2,4,128], index: 2, kind: input, shape index: {}]
  %s3 = inlined_call_operand.hbm [shape: s32[2,1,128], index: 3, kind: output, shape index: {0}]
  %s4 = inlined_call_operand.vmem [shape: f32[2,4,128], index: 4, kind: output, shape index: {1}]
  %s5 = inlined_call_operand.hbm [shape: f32[2,1,128], index: 5, kind: output, shape index: {2}]
  %6 = xla_tuple %s3, %s4, %s5
  %s7 = sld [smem:[#allocation0]]
  $region65: #{det_nms_postprocess_deploy.1} parent=0
    _
  %s9 = ssub.s32 1, %s7
  %s10 = scalar_select 0, %s9, %s7
  $region1: #{det_nms_postprocess_deploy.1} parent=0
    #allocation2 [shape = 'u8[1024]{0}', space=smem, size = 0x400, scoped, tag = 'input window, operand 0, single buffered']
    #allocation3 [shape = 's32[2]{0}', space=sflag, size = 0x8, scoped, tag = 'scoped memory for det_nms_postprocess_deploy.1']
    #allocation4 [shape = 's32[2]{0}', space=sflag, size = 0x8, scoped, tag = 'scoped memory for det_nms_postprocess_deploy.1']
    #allocation5 [shape = 'u8[1024]{0}', space=vmem, size = 0x400, scoped, tag = 'output window, operand 0']
    #allocation6 [shape = 'u8[1024]{0}', space=vmem, size = 0x400, scoped, tag = 'output window, operand 2']
    #allocation7 [shape = 's32[2]{0}', space=sflag, size = 0x8, scoped, tag = 'scoped memory for det_nms_postprocess_deploy.1']
    %11 = vsyncpa [#allocation4], 0
    %12 = vsyncpa [#allocation3], 0
    %s13 = scalar_lea.sflag [#allocation3], 1
    %14 = vsyncpa %s13, 0
    %15 = vsyncpa [#allocation7], 0
    %s16 = scalar_lea.sflag [#allocation7], 1
    %17 = vsyncpa %s16, 0
    loop: start=0, step=1, limit=4
    $region2: #{det_nms_postprocess_deploy.1} parent=1 // loop_pre_header
      _
    $region3: #{det_nms_postprocess_deploy.1} parent=1 // loop_header
      %s19 = sphi 0, %s23
      %p20 = scmp.ge.s32.totalorder %s19, 4
      %s27 = sphi 0, %s27
      %s29 = sphi 0, %s27
      %s30 = sphi 0, %s29
      %s44 = sphi 0, %s30
      %s50 = sphi 0, %s52
      %s53 = sphi 0, %s50
      %s54 = sphi 0, %s53
      %s70 = sphi 0, %s54
      %s76 = sphi 0, %s78
      %s79 = sphi 0, %s76
      %s80 = sphi 0, %s79
      %s96 = sphi 0, %s80
      %s102 = sphi 0, %s104
      %s105 = sphi 0, %s102
      %s106 = sphi 0, %s105
      %s122 = sphi 0, %s106
      %s128 = sphi 0, %s130
      %s131 = sphi 0, %s128
      %s132 = sphi 0, %s131
      %s148 = sphi 0, %s132
      %s154 = sphi 0, %s156
      %s157 = sphi 0, %s154
      %s158 = sphi 0, %s157
      %s174 = sphi 0, %s158
    $region4: #{det_nms_postprocess_deploy.1} parent=1 // loop_header_branch
      %22 = sbr.rel (%p20) target = $region8
    $region5: #{det_nms_postprocess_deploy.1} parent=1 // loop_body
      %s24 = ssub.s32 %s19, 1
      %s25 = ssub.s32 %s19, 2
      %s26 = sadd.s32 %s19, 1
      %s28 = sadd.s32 %s27, 1
      %p31 = scmp.eq.s32.totalorder %s19, 1
      %p32 = scmp.ne.s32.totalorder %s27, %s29
      %p33 = scmp.eq.s32.totalorder %s19, 0
      %p34 = por %p32, %p33
      %p35 = scmp.ne.s32.totalorder %s27, %s29
      %p36 = scmp.eq.s32.totalorder %s24, 1
      %p37 = por %p35, %p36
      %p38 = scmp.ne.s32.totalorder %s29, %s30
      %p39 = scmp.eq.s32.totalorder %s24, 0
      %p40 = por %p38, %p39
      %p41 = scmp.ne.s32.totalorder %s29, %s30
      %p42 = scmp.eq.s32.totalorder %s25, 1
      %p43 = por %p41, %p42
      %p45 = scmp.ne.s32.totalorder %s30, %s44
      %p46 = scmp.eq.s32.totalorder %s25, 0
      %p47 = por %p45, %p46
      %s48 = ssub.s32 %s19, %s26
      %p49 = scmp.eq.s32.totalorder %s48, 0
      %s51 = sadd.s32 %s50, 1
      %s52 = scalar_select %p49, %s50, %s51
      %p55 = pneg %p49
      %p56 = scmp.eq.s32.totalorder %s19, 1
      %p57 = por %p55, %p56
      %p58 = scmp.ne.s32.totalorder %s50, %s53
      %p59 = scmp.eq.s32.totalorder %s19, 0
      %p60 = por %p58, %p59
      %p61 = scmp.ne.s32.totalorder %s50, %s53
      %p62 = scmp.eq.s32.totalorder %s24, 1
      %p63 = por %p61, %p62
      %p64 = scmp.ne.s32.totalorder %s53, %s54
      %p65 = scmp.eq.s32.totalorder %s24, 0
      %p66 = por %p64, %p65
      %p67 = scmp.ne.s32.totalorder %s53, %s54
      %p68 = scmp.eq.s32.totalorder %s25, 1
      %p69 = por %p67, %p68
      %p71 = scmp.ne.s32.totalorder %s54, %s70
      %p72 = scmp.eq.s32.totalorder %s25, 0
      %p73 = por %p71, %p72
      %s74 = ssub.s32 %s19, %s26
      %p75 = scmp.eq.s32.totalorder %s74, 0
      %s77 = sadd.s32 %s76, 1
      %s78 = scalar_select %p75, %s76, %s77
      %p81 = pneg %p75
      %p82 = scmp.eq.s32.totalorder %s19, 1
      %p83 = por %p81, %p82
      %p84 = scmp.ne.s32.totalorder %s76, %s79
      %p85 = scmp.eq.s32.totalorder %s19, 0
      %p86 = por %p84, %p85
      %p87 = scmp.ne.s32.totalorder %s76, %s79
      %p88 = scmp.eq.s32.totalorder %s24, 1
      %p89 = por %p87, %p88
      %p90 = scmp.ne.s32.totalorder %s79, %s80
      %p91 = scmp.eq.s32.totalorder %s24, 0
      %p92 = por %p90, %p91
      %p93 = scmp.ne.s32.totalorder %s79, %s80
      %p94 = scmp.eq.s32.totalorder %s25, 1
      %p95 = por %p93, %p94
      %p97 = scmp.ne.s32.totalorder %s80, %s96
      %p98 = scmp.eq.s32.totalorder %s25, 0
      %p99 = por %p97, %p98
      %s100 = ssub.s32 %s19, %s26
      %p101 = scmp.eq.s32.totalorder %s100, 0
      %s103 = sadd.s32 %s102, 1
      %s104 = scalar_select %p101, %s102, %s103
      %p107 = pneg %p101
      %p108 = scmp.eq.s32.totalorder %s19, 1
      %p109 = por %p107, %p108
      %p110 = scmp.ne.s32.totalorder %s102, %s105
      %p111 = scmp.eq.s32.totalorder %s19, 0
      %p112 = por %p110, %p111
      %p113 = scmp.ne.s32.totalorder %s102, %s105
      %p114 = scmp.eq.s32.totalorder %s24, 1
      %p115 = por %p113, %p114
      %p116 = scmp.ne.s32.totalorder %s105, %s106
      %p117 = scmp.eq.s32.totalorder %s24, 0
      %p118 = por %p116, %p117
      %p119 = scmp.ne.s32.totalorder %s105, %s106
      %p120 = scmp.eq.s32.totalorder %s25, 1
      %p121 = por %p119, %p120
      %p123 = scmp.ne.s32.totalorder %s106, %s122
      %p124 = scmp.eq.s32.totalorder %s25, 0
      %p125 = por %p123, %p124
      %s126 = ssub.s32 %s19, %s26
      %p127 = scmp.eq.s32.totalorder %s126, 0
      %s129 = sadd.s32 %s128, 1
      %s130 = scalar_select %p127, %s128, %s129
      %p133 = pneg %p127
      %p134 = scmp.eq.s32.totalorder %s19, 1
      %p135 = por %p133, %p134
      %p136 = scmp.ne.s32.totalorder %s128, %s131
      %p137 = scmp.eq.s32.totalorder %s19, 0
      %p138 = por %p136, %p137
      %p139 = scmp.ne.s32.totalorder %s128, %s131
      %p140 = scmp.eq.s32.totalorder %s24, 1
      %p141 = por %p139, %p140
      %p142 = scmp.ne.s32.totalorder %s131, %s132
      %p143 = scmp.eq.s32.totalorder %s24, 0
      %p144 = por %p142, %p143
      %p145 = scmp.ne.s32.totalorder %s131, %s132
      %p146 = scmp.eq.s32.totalorder %s25, 1
      %p147 = por %p145, %p146
      %p149 = scmp.ne.s32.totalorder %s132, %s148
      %p150 = scmp.eq.s32.totalorder %s25, 0
      %p151 = por %p149, %p150
      %s152 = ssub.s32 %s19, %s26
      %p153 = scmp.eq.s32.totalorder %s152, 0
      %s155 = sadd.s32 %s154, 1
      %s156 = scalar_select %p153, %s154, %s155
      %p159 = pneg %p153
      %p160 = scmp.eq.s32.totalorder %s19, 1
      %p161 = por %p159, %p160
      %p162 = scmp.ne.s32.totalorder %s154, %s157
      %p163 = scmp.eq.s32.totalorder %s19, 0
      %p164 = por %p162, %p163
      %p165 = scmp.ne.s32.totalorder %s154, %s157
      %p166 = scmp.eq.s32.totalorder %s24, 1
      %p167 = por %p165, %p166
      %p168 = scmp.ne.s32.totalorder %s157, %s158
      %p169 = scmp.eq.s32.totalorder %s24, 0
      %p170 = por %p168, %p169
      %p171 = scmp.ne.s32.totalorder %s157, %s158
      %p172 = scmp.eq.s32.totalorder %s25, 1
      %p173 = por %p171, %p172
      %p175 = scmp.ne.s32.totalorder %s158, %s174
      %p176 = scmp.eq.s32.totalorder %s25, 0
      %p177 = por %p175, %p176
      %p178 = scmp.le.s32.totalorder 1, %s19
      %p179 = scmp.lt.s32.totalorder %s19, 3
      %p180 = pnand %p178, %p179
      %p181 = pneg %p180
      // Predicated region
      $region9: #{det_nms_postprocess_deploy.1} parent=5 // pred_check
        _
      $region10: #{det_nms_postprocess_deploy.1} parent=5 // pred_check_branch
        %183 = sbr.rel (%p180) target = $region12
      $region11: #{det_nms_postprocess_deploy.1} parent=5 // pred_region
        %s184 = ssub.s32 %s19, 1
        // Predicated region
        $region13: #{det_nms_postprocess_deploy.1} parent=11 // pred_check
          %p185 = pneg %p40
        $region14: #{det_nms_postprocess_deploy.1} parent=11 // pred_check_branch
          %187 = sbr.rel (%p185) target = $region16
        $region15: #{det_nms_postprocess_deploy.1} parent=11 // pred_region
          %189 = vsyncadd [#allocation4], 0
          %s191 = sshll.u32 %s0, 4
          %s192 = int_to_ptr.vmem [resolvable:$true] %s191
          %194 = dma.vmem_to_smem %s192, 32, [#allocation2], [#allocation4]
        $region16: #{det_nms_postprocess_deploy.1} parent=11 // pred_fallthru
          _
      $region12: #{det_nms_postprocess_deploy.1} parent=5 // pred_fallthru
        _
      %p195 = scmp.lt.s32.totalorder %s19, 2
      // Predicated region
      $region17: #{det_nms_postprocess_deploy.1} parent=5 // pred_check
        %p196 = pneg %p195
      $region18: #{det_nms_postprocess_deploy.1} parent=5 // pred_check_branch
        %198 = sbr.rel (%p196) target = $region20
      $region19: #{det_nms_postprocess_deploy.1} parent=5 // pred_region
        // Predicated region
        $region21: #{det_nms_postprocess_deploy.1} parent=19 // pred_check
          %p199 = pneg %p60
        $region22: #{det_nms_postprocess_deploy.1} parent=19 // pred_check_branch
          %201 = sbr.rel (%p199) target = $region24
        $region23: #{det_nms_postprocess_deploy.1} parent=19 // pred_region
          %p202 = scmp.lt.s32.totalorder %s19, 1
          %s203 = scalar_select %p202, %s19, 1
          %s204 = smul.addr %s203, 16
          %s205 = smul.addr %s204, 8
          %s206 = scalar_lea.vmem %s1, %s205
        $region24: #{det_nms_postprocess_deploy.1} parent=19 // pred_fallthru
          _
        // Predicated region
        $region25: #{det_nms_postprocess_deploy.1} parent=19 // pred_check
          %p207 = pneg %p86
        $region26: #{det_nms_postprocess_deploy.1} parent=19 // pred_check_branch
          %209 = sbr.rel (%p207) target = $region28
        $region27: #{det_nms_postprocess_deploy.1} parent=19 // pred_region
          %p210 = scmp.lt.s32.totalorder %s19, 1
          %s211 = scalar_select %p210, %s19, 1
          %s212 = smul.addr %s211, 4
          %s213 = scalar_lea.vmem %s2, %s212
        $region28: #{det_nms_postprocess_deploy.1} parent=19 // pred_fallthru
          _
      $region20: #{det_nms_postprocess_deploy.1} parent=5 // pred_fallthru
        _
      %p214 = scmp.le.s32.totalorder 1, %s19
      %p215 = scmp.lt.s32.totalorder %s19, 3
      %p216 = pnand %p214, %p215
      %p217 = pneg %p216
      // Predicated region
      $region29: #{det_nms_postprocess_deploy.1} parent=5 // pred_check
        _
      $region30: #{det_nms_postprocess_deploy.1} parent=5 // pred_check_branch
        %219 = sbr.rel (%p216) target = $region32
      $region31: #{det_nms_postprocess_deploy.1} parent=5 // pred_region
        %s220 = ssub.s32 %s19, 1
        // Predicated region
        $region33: #{det_nms_postprocess_deploy.1} parent=31 // pred_check
          %p221 = pneg %p40
        $region34: #{det_nms_postprocess_deploy.1} parent=31 // pred_check_branch
          %223 = sbr.rel (%p221) target = $region36
        $region35: #{det_nms_postprocess_deploy.1} parent=31 // pred_region
          %225 = dma.done [#allocation4], 32
        $region36: #{det_nms_postprocess_deploy.1} parent=31 // pred_fallthru
          _
        %226 = sfence
        %p227 = pneg %p40
        %p228 = pneg %p37
        %p229 = scmp.lt.s32.totalorder %s24, 1
        %s230 = scalar_select %p229, %s24, 1
        %s231 = smul.addr %s230, 16
        %s232 = smul.addr %s231, 8
        %s233 = scalar_lea.vmem %s1, %s232
        %p234 = pneg %p66
        %p235 = pneg %p63
        %p236 = scmp.lt.s32.totalorder %s24, 1
        %s237 = scalar_select %p236, %s24, 1
        %s238 = smul.addr %s237, 4
        %s239 = scalar_lea.vmem %s2, %s238
        %p240 = pneg %p92
        %p241 = pneg %p89
        %p242 = pneg %p118
        %p243 = pneg %p115
        %s244 = sand.u32 %s105, 1
        %s245 = scalar_lea.sflag [#allocation3], %s244
        %s246 = sand.u32 %s105, 1
        %s247 = scalar_lea.vmem [#allocation5], %s246
        %p248 = pneg %p144
        %p249 = pneg %p141
        %p250 = scmp.lt.s32.totalorder %s24, 1
        %s251 = scalar_select %p250, %s24, 1
        %s252 = smul.addr %s251, 4
        %s253 = scalar_lea.vmem %s4, %s252
        %p254 = pneg %p170
        %p255 = pneg %p167
        %s256 = sand.u32 %s157, 1
        %s257 = scalar_lea.sflag [#allocation7], %s256
        %s258 = sand.u32 %s157, 1
        %s259 = scalar_lea.vmem [#allocation6], %s258
        %p260 = scmp.lt.s32.totalorder %s24, 1
        %s261 = scalar_select %p260, %s24, 1
        %s262 = smul.addr %s261, 16
        %s263 = smul.addr %s262, 8
        %s264 = scalar_lea.vmem %s1, %s263
        %p265 = scmp.lt.s32.totalorder %s24, 1
        %s266 = scalar_select %p265, %s24, 1
        %s267 = smul.addr %s266, 4
        %s268 = scalar_lea.vmem %s2, %s267
        %p269 = scmp.lt.s32.totalorder %s24, 1
        %s270 = scalar_select %p269, %s24, 1
        %s271 = smul.addr %s270, 4
        %s272 = scalar_lea.vmem %s4, %s271
        %s273 = smul.u32 %s24, 128
        %s274 = sld [smem:[#allocation2 + %s273]]
        %s275 = sadd.s32 %s273, 1
        %s276 = sld [smem:[#allocation2 + %s275]]
        %v277 = vld [vmem:[%s268] sm:$0xf]
        %v278 = vmul.f32 %v277, 0.5
        %v280 = vrot.slane %v278, 2
        %v282 = vsub.f32 %v277, %v280
        %v283 = vstv %s274
        %v284 = vmul.f32 %v282, %v283
        %v285 = vstv %s276
        %v286 = vmul.f32 %v282, %v285
        %v287 = vadd.f32 %v277, %v280
        %v288 = vmul.f32 %v287, %v283
        %v289 = vmul.f32 %v287, %v285
        %v291 = vrot.slane %v288, 6
        %v294 = vrot.slane %v289, 6
        %vm296 = vcmask 1040384
        %v297 = vsel %vm296, %v284, %v286
        %vm298 = vcmask 1041408
        %v299 = vsel %vm298, %v297, %v291
        %vm300 = vcmask 1042432
        %v301 = vsel %vm300, %v299, %v294
        %302 = vst [vmem:[%s272] sm:$0xf] %v301
        %v303 = vld [vmem:[%s264] sm:$0xff]
        %v304 = vld [vmem:[%s264 + $0x8] sm:$0xff]
        %v305 = vld [vmem:[%s264 + $0x10] sm:$0xff]
        %v306 = vld [vmem:[%s264 + $0x18] sm:$0xff]
        %v307 = vld [vmem:[%s264 + $0x20] sm:$0xff]
        %v308 = vld [vmem:[%s264 + $0x28] sm:$0xff]
        %v309 = vld [vmem:[%s264 + $0x30] sm:$0xff]
        %v310 = vld [vmem:[%s264 + $0x38] sm:$0xff]
        %v311 = vld [vmem:[%s264 + $0x40] sm:$0xff]
        %v312 = vld [vmem:[%s264 + $0x48] sm:$0xff]
        %v313 = vld [vmem:[%s264 + $0x50] sm:$0xff]
        %v314 = vld [vmem:[%s264 + $0x58] sm:$0xff]
        %v315 = vld [vmem:[%s264 + $0x60] sm:$0xff]
        %v316 = vld [vmem:[%s264 + $0x68] sm:$0xff]
        %v317 = vld [vmem:[%s264 + $0x70] sm:$0xff]
        %v318 = vld [vmem:[%s264 + $0x78] sm:$0xff]
        %319 = vmax.xlane.f32.xlu0 %v303
        %v320 = vpop.xlane.xlu0 %319
        %321 = vmax.xlane.f32.xlu0 %v304
        %v322 = vpop.xlane.xlu0 %321
        %323 = vmax.xlane.f32.xlu0 %v305
        %v324 = vpop.xlane.xlu0 %323
        %325 = vmax.xlane.f32.xlu0 %v306
        %v326 = vpop.xlane.xlu0 %325
        %327 = vmax.xlane.f32.xlu0 %v307
        %v328 = vpop.xlane.xlu0 %327
        %329 = vmax.xlane.f32.xlu0 %v308
        %v330 = vpop.xlane.xlu0 %329
        %331 = vmax.xlane.f32.xlu0 %v309
        %v332 = vpop.xlane.xlu0 %331
        %333 = vmax.xlane.f32.xlu0 %v310
        %v334 = vpop.xlane.xlu0 %333
        %335 = vmax.xlane.f32.xlu0 %v311
        %v336 = vpop.xlane.xlu0 %335
        %337 = vmax.xlane.f32.xlu0 %v312
        %v338 = vpop.xlane.xlu0 %337
        %339 = vmax.xlane.f32.xlu0 %v313
        %v340 = vpop.xlane.xlu0 %339
        %341 = vmax.xlane.f32.xlu0 %v314
        %v342 = vpop.xlane.xlu0 %341
        %343 = vmax.xlane.f32.xlu0 %v315
        %v344 = vpop.xlane.xlu0 %343
        %345 = vmax.xlane.f32.xlu0 %v316
        %v346 = vpop.xlane.xlu0 %345
        %347 = vmax.xlane.f32.xlu0 %v317
        %v348 = vpop.xlane.xlu0 %347
        %349 = vmax.xlane.f32.xlu0 %v318
        %v350 = vpop.xlane.xlu0 %349
        %v351 = vlaneseq
        %v352 = vand.u32 %v351, 127
        %vm353 = vcmp.eq.f32.partialorder %v303, %v320
        %vm354 = vcmp.eq.f32.partialorder %v304, %v322
        %vm355 = vcmp.eq.f32.partialorder %v305, %v324
        %vm356 = vcmp.eq.f32.partialorder %v306, %v326
        %vm357 = vcmp.eq.f32.partialorder %v307, %v328
        %vm358 = vcmp.eq.f32.partialorder %v308, %v330
        %vm359 = vcmp.eq.f32.partialorder %v309, %v332
        %vm360 = vcmp.eq.f32.partialorder %v310, %v334
        %vm361 = vcmp.eq.f32.partialorder %v311, %v336
        %vm362 = vcmp.eq.f32.partialorder %v312, %v338
        %vm363 = vcmp.eq.f32.partialorder %v313, %v340
        %vm364 = vcmp.eq.f32.partialorder %v314, %v342
        %vm365 = vcmp.eq.f32.partialorder %v315, %v344
        %vm366 = vcmp.eq.f32.partialorder %v316, %v346
        %vm367 = vcmp.eq.f32.partialorder %v317, %v348
        %vm368 = vcmp.eq.f32.partialorder %v318, %v350
        %v369 = vsel %vm353, %v352, 128
        %v370 = vsel %vm354, %v352, 128
        %v371 = vsel %vm355, %v352, 128
        %v372 = vsel %vm356, %v352, 128
        %v373 = vsel %vm357, %v352, 128
        %v374 = vsel %vm358, %v352, 128
        %v375 = vsel %vm359, %v352, 128
        %v376 = vsel %vm360, %v352, 128
        %v377 = vsel %vm361, %v352, 128
        %v378 = vsel %vm362, %v352, 128
        %v379 = vsel %vm363, %v352, 128
        %v380 = vsel %vm364, %v352, 128
        %v381 = vsel %vm365, %v352, 128
        %v382 = vsel %vm366, %v352, 128
        %v383 = vsel %vm367, %v352, 128
        %v384 = vsel %vm368, %v352, 128
        %v385 = vand.u32 %v369, 65535
        %v386 = vshra.s32 %v369, 16
        %v387 = vcvt.s32.f32 %v385
        %v388 = vcvt.s32.f32 %v386
        %389 = vmin.xlane.f32.xlu0 %v388
        %v390 = vpop.xlane.xlu0 %389
        %vm391 = vcmp.eq.f32.partialorder %v388, %v390
        %v392 = vsel %vm391, %v387, inf
        %393 = vmin.xlane.f32.xlu0 %v392
        %v394 = vpop.xlane.xlu0 %393
        %v395 = vcvt.f32.s32 %v394
        %v396 = vcvt.f32.s32 %v390
        %v397 = vshll.u32 %v396, 16
        %v398 = vadd.s32 %v397, %v395
        %v399 = vand.u32 %v370, 65535
        %v400 = vshra.s32 %v370, 16
        %v401 = vcvt.s32.f32 %v399
        %v402 = vcvt.s32.f32 %v400
        %403 = vmin.xlane.f32.xlu0 %v402
        %v404 = vpop.xlane.xlu0 %403
        %vm405 = vcmp.eq.f32.partialorder %v402, %v404
        %v406 = vsel %vm405, %v401, inf
        %407 = vmin.xlane.f32.xlu0 %v406
        %v408 = vpop.xlane.xlu0 %407
        %v409 = vcvt.f32.s32 %v408
        %v410 = vcvt.f32.s32 %v404
        %v411 = vshll.u32 %v410, 16
        %v412 = vadd.s32 %v411, %v409
        %v413 = vand.u32 %v371, 65535
        %v414 = vshra.s32 %v371, 16
        %v415 = vcvt.s32.f32 %v413
        %v416 = vcvt.s32.f32 %v414
        %417 = vmin.xlane.f32.xlu0 %v416
        %v418 = vpop.xlane.xlu0 %417
        %vm419 = vcmp.eq.f32.partialorder %v416, %v418
        %v420 = vsel %vm419, %v415, inf
        %421 = vmin.xlane.f32.xlu0 %v420
        %v422 = vpop.xlane.xlu0 %421
        %v423 = vcvt.f32.s32 %v422
        %v424 = vcvt.f32.s32 %v418
        %v425 = vshll.u32 %v424, 16
        %v426 = vadd.s32 %v425, %v423
        %v427 = vand.u32 %v372, 65535
        %v428 = vshra.s32 %v372, 16
        %v429 = vcvt.s32.f32 %v427
        %v430 = vcvt.s32.f32 %v428
        %431 = vmin.xlane.f32.xlu0 %v430
        %v432 = vpop.xlane.xlu0 %431
        %vm433 = vcmp.eq.f32.partialorder %v430, %v432
        %v434 = vsel %vm433, %v429, inf
        %435 = vmin.xlane.f32.xlu0 %v434
        %v436 = vpop.xlane.xlu0 %435
        %v437 = vcvt.f32.s32 %v436
        %v438 = vcvt.f32.s32 %v432
        %v439 = vshll.u32 %v438, 16
        %v440 = vadd.s32 %v439, %v437
        %v441 = vand.u32 %v373, 65535
        %v442 = vshra.s32 %v373, 16
        %v443 = vcvt.s32.f32 %v441
        %v444 = vcvt.s32.f32 %v442
        %445 = vmin.xlane.f32.xlu0 %v444
        %v446 = vpop.xlane.xlu0 %445
        %vm447 = vcmp.eq.f32.partialorder %v444, %v446
        %v448 = vsel %vm447, %v443, inf
        %449 = vmin.xlane.f32.xlu0 %v448
        %v450 = vpop.xlane.xlu0 %449
        %v451 = vcvt.f32.s32 %v450
        %v452 = vcvt.f32.s32 %v446
        %v453 = vshll.u32 %v452, 16
        %v454 = vadd.s32 %v453, %v451
        %v455 = vand.u32 %v374, 65535
        %v456 = vshra.s32 %v374, 16
        %v457 = vcvt.s32.f32 %v455
        %v458 = vcvt.s32.f32 %v456
        %459 = vmin.xlane.f32.xlu0 %v458
        %v460 = vpop.xlane.xlu0 %459
        %vm461 = vcmp.eq.f32.partialorder %v458, %v460
        %v462 = vsel %vm461, %v457, inf
        %463 = vmin.xlane.f32.xlu0 %v462
        %v464 = vpop.xlane.xlu0 %463
        %v465 = vcvt.f32.s32 %v464
        %v466 = vcvt.f32.s32 %v460
        %v467 = vshll.u32 %v466, 16
        %v468 = vadd.s32 %v467, %v465
        %v469 = vand.u32 %v375, 65535
        %v470 = vshra.s32 %v375, 16
        %v471 = vcvt.s32.f32 %v469
        %v472 = vcvt.s32.f32 %v470
        %473 = vmin.xlane.f32.xlu0 %v472
        %v474 = vpop.xlane.xlu0 %473
        %vm475 = vcmp.eq.f32.partialorder %v472, %v474
        %v476 = vsel %vm475, %v471, inf
        %477 = vmin.xlane.f32.xlu0 %v476
        %v478 = vpop.xlane.xlu0 %477
        %v479 = vcvt.f32.s32 %v478
        %v480 = vcvt.f32.s32 %v474
        %v481 = vshll.u32 %v480, 16
        %v482 = vadd.s32 %v481, %v479
        %v483 = vand.u32 %v376, 65535
        %v484 = vshra.s32 %v376, 16
        %v485 = vcvt.s32.f32 %v483
        %v486 = vcvt.s32.f32 %v484
        %487 = vmin.xlane.f32.xlu0 %v486
        %v488 = vpop.xlane.xlu0 %487
        %vm489 = vcmp.eq.f32.partialorder %v486, %v488
        %v490 = vsel %vm489, %v485, inf
        %491 = vmin.xlane.f32.xlu0 %v490
        %v492 = vpop.xlane.xlu0 %491
        %v493 = vcvt.f32.s32 %v492
        %v494 = vcvt.f32.s32 %v488
        %v495 = vshll.u32 %v494, 16
        %v496 = vadd.s32 %v495, %v493
        %v497 = vand.u32 %v377, 65535
        %v498 = vshra.s32 %v377, 16
        %v499 = vcvt.s32.f32 %v497
        %v500 = vcvt.s32.f32 %v498
        %501 = vmin.xlane.f32.xlu0 %v500
        %v502 = vpop.xlane.xlu0 %501
        %vm503 = vcmp.eq.f32.partialorder %v500, %v502
        %v504 = vsel %vm503, %v499, inf
        %505 = vmin.xlane.f32.xlu0 %v504
        %v506 = vpop.xlane.xlu0 %505
        %v507 = vcvt.f32.s32 %v506
        %v508 = vcvt.f32.s32 %v502
        %v509 = vshll.u32 %v508, 16
        %v510 = vadd.s32 %v509, %v507
        %v511 = vand.u32 %v378, 65535
        %v512 = vshra.s32 %v378, 16
        %v513 = vcvt.s32.f32 %v511
        %v514 = vcvt.s32.f32 %v512
        %515 = vmin.xlane.f32.xlu0 %v514
        %v516 = vpop.xlane.xlu0 %515
        %vm517 = vcmp.eq.f32.partialorder %v514, %v516
        %v518 = vsel %vm517, %v513, inf
        %519 = vmin.xlane.f32.xlu0 %v518
        %v520 = vpop.xlane.xlu0 %519
        %v521 = vcvt.f32.s32 %v520
        %v522 = vcvt.f32.s32 %v516
        %v523 = vshll.u32 %v522, 16
        %v524 = vadd.s32 %v523, %v521
        %v525 = vand.u32 %v379, 65535
        %v526 = vshra.s32 %v379, 16
        %v527 = vcvt.s32.f32 %v525
        %v528 = vcvt.s32.f32 %v526
        %529 = vmin.xlane.f32.xlu0 %v528
        %v530 = vpop.xlane.xlu0 %529
        %vm531 = vcmp.eq.f32.partialorder %v528, %v530
        %v532 = vsel %vm531, %v527, inf
        %533 = vmin.xlane.f32.xlu0 %v532
        %v534 = vpop.xlane.xlu0 %533
        %v535 = vcvt.f32.s32 %v534
        %v536 = vcvt.f32.s32 %v530
        %v537 = vshll.u32 %v536, 16
        %v538 = vadd.s32 %v537, %v535
        %v539 = vand.u32 %v380, 65535
        %v540 = vshra.s32 %v380, 16
        %v541 = vcvt.s32.f32 %v539
        %v542 = vcvt.s32.f32 %v540
        %543 = vmin.xlane.f32.xlu0 %v542
        %v544 = vpop.xlane.xlu0 %543
        %vm545 = vcmp.eq.f32.partialorder %v542, %v544
        %v546 = vsel %vm545, %v541, inf
        %547 = vmin.xlane.f32.xlu0 %v546
        %v548 = vpop.xlane.xlu0 %547
        %v549 = vcvt.f32.s32 %v548
        %v550 = vcvt.f32.s32 %v544
        %v551 = vshll.u32 %v550, 16
        %v552 = vadd.s32 %v551, %v549
        %v553 = vand.u32 %v381, 65535
        %v554 = vshra.s32 %v381, 16
        %v555 = vcvt.s32.f32 %v553
        %v556 = vcvt.s32.f32 %v554
        %557 = vmin.xlane.f32.xlu0 %v556
        %v558 = vpop.xlane.xlu0 %557
        %vm559 = vcmp.eq.f32.partialorder %v556, %v558
        %v560 = vsel %vm559, %v555, inf
        %561 = vmin.xlane.f32.xlu0 %v560
        %v562 = vpop.xlane.xlu0 %561
        %v563 = vcvt.f32.s32 %v562
        %v564 = vcvt.f32.s32 %v558
        %v565 = vshll.u32 %v564, 16
        %v566 = vadd.s32 %v565, %v563
        %v567 = vand.u32 %v382, 65535
        %v568 = vshra.s32 %v382, 16
        %v569 = vcvt.s32.f32 %v567
        %v570 = vcvt.s32.f32 %v568
        %571 = vmin.xlane.f32.xlu0 %v570
        %v572 = vpop.xlane.xlu0 %571
        %vm573 = vcmp.eq.f32.partialorder %v570, %v572
        %v574 = vsel %vm573, %v569, inf
        %575 = vmin.xlane.f32.xlu0 %v574
        %v576 = vpop.xlane.xlu0 %575
        %v577 = vcvt.f32.s32 %v576
        %v578 = vcvt.f32.s32 %v572
        %v579 = vshll.u32 %v578, 16
        %v580 = vadd.s32 %v579, %v577
        %v581 = vand.u32 %v383, 65535
        %v582 = vshra.s32 %v383, 16
        %v583 = vcvt.s32.f32 %v581
        %v584 = vcvt.s32.f32 %v582
        %585 = vmin.xlane.f32.xlu0 %v584
        %v586 = vpop.xlane.xlu0 %585
        %vm587 = vcmp.eq.f32.partialorder %v584, %v586
        %v588 = vsel %vm587, %v583, inf
        %589 = vmin.xlane.f32.xlu0 %v588
        %v590 = vpop.xlane.xlu0 %589
        %v591 = vcvt.f32.s32 %v590
        %v592 = vcvt.f32.s32 %v586
        %v593 = vshll.u32 %v592, 16
        %v594 = vadd.s32 %v593, %v591
        %v595 = vand.u32 %v384, 65535
        %v596 = vshra.s32 %v384, 16
        %v597 = vcvt.s32.f32 %v595
        %v598 = vcvt.s32.f32 %v596
        %599 = vmin.xlane.f32.xlu0 %v598
        %v600 = vpop.xlane.xlu0 %599
        %vm601 = vcmp.eq.f32.partialorder %v598, %v600
        %v602 = vsel %vm601, %v597, inf
        %603 = vmin.xlane.f32.xlu0 %v602
        %v604 = vpop.xlane.xlu0 %603
        %v605 = vcvt.f32.s32 %v604
        %v606 = vcvt.f32.s32 %v600
        %v607 = vshll.u32 %v606, 16
        %v608 = vadd.s32 %v607, %v605
        %v609 = vperm.slane %v398, %v352
        %v610 = vadd.s32 %v352, 4294967288
        %v611 = vperm.slane %v412, %v610
        %vm612 = vcmask 130112
        %v613 = vsel %vm612, %v611, %v609
        %v614 = vadd.s32 %v352, 4294967280
        %v615 = vperm.slane %v426, %v614
        %vm616 = vcmask 195712
        %v617 = vsel %vm616, %v615, %v613
        %v618 = vadd.s32 %v352, 4294967272
        %v619 = vperm.slane %v440, %v618
        %vm620 = vcmask 261312
        %v621 = vsel %vm620, %v619, %v617
        %v622 = vadd.s32 %v352, 4294967264
        %v623 = vperm.slane %v454, %v622
        %vm624 = vcmask 326912
        %v625 = vsel %vm624, %v623, %v621
        %v626 = vadd.s32 %v352, 4294967256
        %v627 = vperm.slane %v468, %v626
        %vm628 = vcmask 392512
        %v629 = vsel %vm628, %v627, %v625
        %v630 = vadd.s32 %v352, 4294967248
        %v631 = vperm.slane %v482, %v630
        %vm632 = vcmask 458112
        %v633 = vsel %vm632, %v631, %v629
        %v634 = vadd.s32 %v352, 4294967240
        %v635 = vperm.slane %v496, %v634
        %vm636 = vcmask 523712
        %v637 = vsel %vm636, %v635, %v633
        %v638 = vadd.s32 %v352, 4294967232
        %v639 = vperm.slane %v510, %v638
        %vm640 = vcmask 589312
        %v641 = vsel %vm640, %v639, %v637
        %v642 = vadd.s32 %v352, 4294967224
        %v643 = vperm.slane %v524, %v642
        %vm644 = vcmask 654912
        %v645 = vsel %vm644, %v643, %v641
        %v646 = vadd.s32 %v352, 4294967216
        %v647 = vperm.slane %v538, %v646
        %vm648 = vcmask 720512
        %v649 = vsel %vm648, %v647, %v645
        %v650 = vadd.s32 %v352, 4294967208
        %v651 = vperm.slane %v552, %v650
        %vm652 = vcmask 786112
        %v653 = vsel %vm652, %v651, %v649
        %v654 = vadd.s32 %v352, 4294967200
        %v655 = vperm.slane %v566, %v654
        %vm656 = vcmask 851712
        %v657 = vsel %vm656, %v655, %v653
        %v658 = vadd.s32 %v352, 4294967192
        %v659 = vperm.slane %v580, %v658
        %vm660 = vcmask 917312
        %v661 = vsel %vm660, %v659, %v657
        %v662 = vadd.s32 %v352, 4294967184
        %v663 = vperm.slane %v594, %v662
        %vm664 = vcmask 982912
        %v665 = vsel %vm664, %v663, %v661
        %v666 = vadd.s32 %v352, 4294967176
        %v667 = vperm.slane %v608, %v666
        %vm668 = vcmask 1048512
        %v669 = vsel %vm668, %v667, %v665
        %670 = vst [vmem:[%s247] sm:$0x1] %v669
        %v671 = vxor.u32 %v320, 2147483648
        %v672 = vxor.u32 %v322, 2147483648
        %v673 = vxor.u32 %v324, 2147483648
        %v674 = vxor.u32 %v326, 2147483648
        %v675 = vxor.u32 %v328, 2147483648
        %v676 = vxor.u32 %v330, 2147483648
        %v677 = vxor.u32 %v332, 2147483648
        %v678 = vxor.u32 %v334, 2147483648
        %v679 = vxor.u32 %v336, 2147483648
        %v680 = vxor.u32 %v338, 2147483648
        %v681 = vxor.u32 %v340, 2147483648
        %v682 = vxor.u32 %v342, 2147483648
        %v683 = vxor.u32 %v344, 2147483648
        %v684 = vxor.u32 %v346, 2147483648
        %v685 = vxor.u32 %v348, 2147483648
        %v686 = vxor.u32 %v350, 2147483648
        %v687 = vmul.f32 %v671, 1.442695
        %v688 = vpow.pop %v687
        %v689 = vmul.f32 %v672, 1.442695
        %v690 = vpow.pop %v689
        %v691 = vmul.f32 %v673, 1.442695
        %v692 = vpow.pop %v691
        %v693 = vmul.f32 %v674, 1.442695
        %v694 = vpow.pop %v693
        %v695 = vmul.f32 %v675, 1.442695
        %v696 = vpow.pop %v695
        %v697 = vmul.f32 %v676, 1.442695
        %v698 = vpow.pop %v697
        %v699 = vmul.f32 %v677, 1.442695
        %v700 = vpow.pop %v699
        %v701 = vmul.f32 %v678, 1.442695
        %v702 = vpow.pop %v701
        %v703 = vmul.f32 %v679, 1.442695
        %v704 = vpow.pop %v703
        %v705 = vmul.f32 %v680, 1.442695
        %v706 = vpow.pop %v705
        %v707 = vmul.f32 %v681, 1.442695
        %v708 = vpow.pop %v707
        %v709 = vmul.f32 %v682, 1.442695
        %v710 = vpow.pop %v709
        %v711 = vmul.f32 %v683, 1.442695
        %v712 = vpow.pop %v711
        %v713 = vmul.f32 %v684, 1.442695
        %v714 = vpow.pop %v713
        %v715 = vmul.f32 %v685, 1.442695
        %v716 = vpow.pop %v715
        %v717 = vmul.f32 %v686, 1.442695
        %v718 = vpow.pop %v717
        %v719 = vadd.f32 %v688, 1.0
        %v720 = vadd.f32 %v690, 1.0
        %v721 = vadd.f32 %v692, 1.0
        %v722 = vadd.f32 %v694, 1.0
        %v723 = vadd.f32 %v696, 1.0
        %v724 = vadd.f32 %v698, 1.0
        %v725 = vadd.f32 %v700, 1.0
        %v726 = vadd.f32 %v702, 1.0
        %v727 = vadd.f32 %v704, 1.0
        %v728 = vadd.f32 %v706, 1.0
        %v729 = vadd.f32 %v708, 1.0
        %v730 = vadd.f32 %v710, 1.0
        %v731 = vadd.f32 %v712, 1.0
        %v732 = vadd.f32 %v714, 1.0
        %v733 = vadd.f32 %v716, 1.0
        %v734 = vadd.f32 %v718, 1.0
        %v735 = vrcp.pop %v719
        %v736 = vmul.f32 %v719, %v735
        %v737 = vsub.f32 1.0, %v736
        %v738 = vmul.f32 %v735, %v737
        %v739 = vadd.f32 %v735, %v738
        %vm740 = vweird.f32 %v719
        %vm741 = vweird.f32 %v735
        %vm742 = vmor %vm740, %vm741
        %v743 = vsel %vm742, %v735, %v739
        %v744 = vand.u32 2147483647, %v719
        %vm745 = vcmp.eq.f32.partialorder %v744, 8.507059e+37
        %v746 = vand.u32 %v719, 2147483648
        %v747 = vor.u32 1.1754944e-38, %v746
        %v748 = vsel %vm745, %v747, %v743
        %v749 = vmul.f32 1.0, %v748
        %v750 = vrcp.pop %v720
        %v751 = vmul.f32 %v720, %v750
        %v752 = vsub.f32 1.0, %v751
        %v753 = vmul.f32 %v750, %v752
        %v754 = vadd.f32 %v750, %v753
        %vm755 = vweird.f32 %v720
        %vm756 = vweird.f32 %v750
        %vm757 = vmor %vm755, %vm756
        %v758 = vsel %vm757, %v750, %v754
        %v759 = vand.u32 2147483647, %v720
        %vm760 = vcmp.eq.f32.partialorder %v759, 8.507059e+37
        %v761 = vand.u32 %v720, 2147483648
        %v762 = vor.u32 1.1754944e-38, %v761
        %v763 = vsel %vm760, %v762, %v758
        %v764 = vmul.f32 1.0, %v763
        %v765 = vrcp.pop %v721
        %v766 = vmul.f32 %v721, %v765
        %v767 = vsub.f32 1.0, %v766
        %v768 = vmul.f32 %v765, %v767
        %v769 = vadd.f32 %v765, %v768
        %vm770 = vweird.f32 %v721
        %vm771 = vweird.f32 %v765
        %vm772 = vmor %vm770, %vm771
        %v773 = vsel %vm772, %v765, %v769
        %v774 = vand.u32 2147483647, %v721
        %vm775 = vcmp.eq.f32.partialorder %v774, 8.507059e+37
        %v776 = vand.u32 %v721, 2147483648
        %v777 = vor.u32 1.1754944e-38, %v776
        %v778 = vsel %vm775, %v777, %v773
        %v779 = vmul.f32 1.0, %v778
        %v780 = vrcp.pop %v722
        %v781 = vmul.f32 %v722, %v780
        %v782 = vsub.f32 1.0, %v781
        %v783 = vmul.f32 %v780, %v782
        %v784 = vadd.f32 %v780, %v783
        %vm785 = vweird.f32 %v722
        %vm786 = vweird.f32 %v780
        %vm787 = vmor %vm785, %vm786
        %v788 = vsel %vm787, %v780, %v784
        %v789 = vand.u32 2147483647, %v722
        %vm790 = vcmp.eq.f32.partialorder %v789, 8.507059e+37
        %v791 = vand.u32 %v722, 2147483648
        %v792 = vor.u32 1.1754944e-38, %v791
        %v793 = vsel %vm790, %v792, %v788
        %v794 = vmul.f32 1.0, %v793
        %v795 = vrcp.pop %v723
        %v796 = vmul.f32 %v723, %v795
        %v797 = vsub.f32 1.0, %v796
        %v798 = vmul.f32 %v795, %v797
        %v799 = vadd.f32 %v795, %v798
        %vm800 = vweird.f32 %v723
        %vm801 = vweird.f32 %v795
        %vm802 = vmor %vm800, %vm801
        %v803 = vsel %vm802, %v795, %v799
        %v804 = vand.u32 2147483647, %v723
        %vm805 = vcmp.eq.f32.partialorder %v804, 8.507059e+37
        %v806 = vand.u32 %v723, 2147483648
        %v807 = vor.u32 1.1754944e-38, %v806
        %v808 = vsel %vm805, %v807, %v803
        %v809 = vmul.f32 1.0, %v808
        %v810 = vrcp.pop %v724
        %v811 = vmul.f32 %v724, %v810
        %v812 = vsub.f32 1.0, %v811
        %v813 = vmul.f32 %v810, %v812
        %v814 = vadd.f32 %v810, %v813
        %vm815 = vweird.f32 %v724
        %vm816 = vweird.f32 %v810
        %vm817 = vmor %vm815, %vm816
        %v818 = vsel %vm817, %v810, %v814
        %v819 = vand.u32 2147483647, %v724
        %vm820 = vcmp.eq.f32.partialorder %v819, 8.507059e+37
        %v821 = vand.u32 %v724, 2147483648
        %v822 = vor.u32 1.1754944e-38, %v821
        %v823 = vsel %vm820, %v822, %v818
        %v824 = vmul.f32 1.0, %v823
        %v825 = vrcp.pop %v725
        %v826 = vmul.f32 %v725, %v825
        %v827 = vsub.f32 1.0, %v826
        %v828 = vmul.f32 %v825, %v827
        %v829 = vadd.f32 %v825, %v828
        %vm830 = vweird.f32 %v725
        %vm831 = vweird.f32 %v825
        %vm832 = vmor %vm830, %vm831
        %v833 = vsel %vm832, %v825, %v829
        %v834 = vand.u32 2147483647, %v725
        %vm835 = vcmp.eq.f32.partialorder %v834, 8.507059e+37
        %v836 = vand.u32 %v725, 2147483648
        %v837 = vor.u32 1.1754944e-38, %v836
        %v838 = vsel %vm835, %v837, %v833
        %v839 = vmul.f32 1.0, %v838
        %v840 = vrcp.pop %v726
        %v841 = vmul.f32 %v726, %v840
        %v842 = vsub.f32 1.0, %v841
        %v843 = vmul.f32 %v840, %v842
        %v844 = vadd.f32 %v840, %v843
        %vm845 = vweird.f32 %v726
        %vm846 = vweird.f32 %v840
        %vm847 = vmor %vm845, %vm846
        %v848 = vsel %vm847, %v840, %v844
        %v849 = vand.u32 2147483647, %v726
        %vm850 = vcmp.eq.f32.partialorder %v849, 8.507059e+37
        %v851 = vand.u32 %v726, 2147483648
        %v852 = vor.u32 1.1754944e-38, %v851
        %v853 = vsel %vm850, %v852, %v848
        %v854 = vmul.f32 1.0, %v853
        %v855 = vrcp.pop %v727
        %v856 = vmul.f32 %v727, %v855
        %v857 = vsub.f32 1.0, %v856
        %v858 = vmul.f32 %v855, %v857
        %v859 = vadd.f32 %v855, %v858
        %vm860 = vweird.f32 %v727
        %vm861 = vweird.f32 %v855
        %vm862 = vmor %vm860, %vm861
        %v863 = vsel %vm862, %v855, %v859
        %v864 = vand.u32 2147483647, %v727
        %vm865 = vcmp.eq.f32.partialorder %v864, 8.507059e+37
        %v866 = vand.u32 %v727, 2147483648
        %v867 = vor.u32 1.1754944e-38, %v866
        %v868 = vsel %vm865, %v867, %v863
        %v869 = vmul.f32 1.0, %v868
        %v870 = vrcp.pop %v728
        %v871 = vmul.f32 %v728, %v870
        %v872 = vsub.f32 1.0, %v871
        %v873 = vmul.f32 %v870, %v872
        %v874 = vadd.f32 %v870, %v873
        %vm875 = vweird.f32 %v728
        %vm876 = vweird.f32 %v870
        %vm877 = vmor %vm875, %vm876
        %v878 = vsel %vm877, %v870, %v874
        %v879 = vand.u32 2147483647, %v728
        %vm880 = vcmp.eq.f32.partialorder %v879, 8.507059e+37
        %v881 = vand.u32 %v728, 2147483648
        %v882 = vor.u32 1.1754944e-38, %v881
        %v883 = vsel %vm880, %v882, %v878
        %v884 = vmul.f32 1.0, %v883
        %v885 = vrcp.pop %v729
        %v886 = vmul.f32 %v729, %v885
        %v887 = vsub.f32 1.0, %v886
        %v888 = vmul.f32 %v885, %v887
        %v889 = vadd.f32 %v885, %v888
        %vm890 = vweird.f32 %v729
        %vm891 = vweird.f32 %v885
        %vm892 = vmor %vm890, %vm891
        %v893 = vsel %vm892, %v885, %v889
        %v894 = vand.u32 2147483647, %v729
        %vm895 = vcmp.eq.f32.partialorder %v894, 8.507059e+37
        %v896 = vand.u32 %v729, 2147483648
        %v897 = vor.u32 1.1754944e-38, %v896
        %v898 = vsel %vm895, %v897, %v893
        %v899 = vmul.f32 1.0, %v898
        %v900 = vrcp.pop %v730
        %v901 = vmul.f32 %v730, %v900
        %v902 = vsub.f32 1.0, %v901
        %v903 = vmul.f32 %v900, %v902
        %v904 = vadd.f32 %v900, %v903
        %vm905 = vweird.f32 %v730
        %vm906 = vweird.f32 %v900
        %vm907 = vmor %vm905, %vm906
        %v908 = vsel %vm907, %v900, %v904
        %v909 = vand.u32 2147483647, %v730
        %vm910 = vcmp.eq.f32.partialorder %v909, 8.507059e+37
        %v911 = vand.u32 %v730, 2147483648
        %v912 = vor.u32 1.1754944e-38, %v911
        %v913 = vsel %vm910, %v912, %v908
        %v914 = vmul.f32 1.0, %v913
        %v915 = vrcp.pop %v731
        %v916 = vmul.f32 %v731, %v915
        %v917 = vsub.f32 1.0, %v916
        %v918 = vmul.f32 %v915, %v917
        %v919 = vadd.f32 %v915, %v918
        %vm920 = vweird.f32 %v731
        %vm921 = vweird.f32 %v915
        %vm922 = vmor %vm920, %vm921
        %v923 = vsel %vm922, %v915, %v919
        %v924 = vand.u32 2147483647, %v731
        %vm925 = vcmp.eq.f32.partialorder %v924, 8.507059e+37
        %v926 = vand.u32 %v731, 2147483648
        %v927 = vor.u32 1.1754944e-38, %v926
        %v928 = vsel %vm925, %v927, %v923
        %v929 = vmul.f32 1.0, %v928
        %v930 = vrcp.pop %v732
        %v931 = vmul.f32 %v732, %v930
        %v932 = vsub.f32 1.0, %v931
        %v933 = vmul.f32 %v930, %v932
        %v934 = vadd.f32 %v930, %v933
        %vm935 = vweird.f32 %v732
        %vm936 = vweird.f32 %v930
        %vm937 = vmor %vm935, %vm936
        %v938 = vsel %vm937, %v930, %v934
        %v939 = vand.u32 2147483647, %v732
        %vm940 = vcmp.eq.f32.partialorder %v939, 8.507059e+37
        %v941 = vand.u32 %v732, 2147483648
        %v942 = vor.u32 1.1754944e-38, %v941
        %v943 = vsel %vm940, %v942, %v938
        %v944 = vmul.f32 1.0, %v943
        %v945 = vrcp.pop %v733
        %v946 = vmul.f32 %v733, %v945
        %v947 = vsub.f32 1.0, %v946
        %v948 = vmul.f32 %v945, %v947
        %v949 = vadd.f32 %v945, %v948
        %vm950 = vweird.f32 %v733
        %vm951 = vweird.f32 %v945
        %vm952 = vmor %vm950, %vm951
        %v953 = vsel %vm952, %v945, %v949
        %v954 = vand.u32 2147483647, %v733
        %vm955 = vcmp.eq.f32.partialorder %v954, 8.507059e+37
        %v956 = vand.u32 %v733, 2147483648
        %v957 = vor.u32 1.1754944e-38, %v956
        %v958 = vsel %vm955, %v957, %v953
        %v959 = vmul.f32 1.0, %v958
        %v960 = vrcp.pop %v734
        %v961 = vmul.f32 %v734, %v960
        %v962 = vsub.f32 1.0, %v961
        %v963 = vmul.f32 %v960, %v962
        %v964 = vadd.f32 %v960, %v963
        %vm965 = vweird.f32 %v734
        %vm966 = vweird.f32 %v960
        %vm967 = vmor %vm965, %vm966
        %v968 = vsel %vm967, %v960, %v964
        %v969 = vand.u32 2147483647, %v734
        %vm970 = vcmp.eq.f32.partialorder %v969, 8.507059e+37
        %v971 = vand.u32 %v734, 2147483648
        %v972 = vor.u32 1.1754944e-38, %v971
        %v973 = vsel %vm970, %v972, %v968
        %v974 = vmul.f32 1.0, %v973
        %v991 = vperm.slane %v749, %v352
        %v992 = vperm.slane %v764, %v610
        %v993 = vsel %vm612, %v992, %v991
        %v994 = vperm.slane %v779, %v614
        %v995 = vsel %vm616, %v994, %v993
        %v996 = vperm.slane %v794, %v618
        %v997 = vsel %vm620, %v996, %v995
        %v998 = vperm.slane %v809, %v622
        %v999 = vsel %vm624, %v998, %v997
        %v1000 = vperm.slane %v824, %v626
        %v1001 = vsel %vm628, %v1000, %v999
        %v1002 = vperm.slane %v839, %v630
        %v1003 = vsel %vm632, %v1002, %v1001
        %v1004 = vperm.slane %v854, %v634
        %v1005 = vsel %vm636, %v1004, %v1003
        %v1006 = vperm.slane %v869, %v638
        %v1007 = vsel %vm640, %v1006, %v1005
        %v1008 = vperm.slane %v884, %v642
        %v1009 = vsel %vm644, %v1008, %v1007
        %v1010 = vperm.slane %v899, %v646
        %v1011 = vsel %vm648, %v1010, %v1009
        %v1012 = vperm.slane %v914, %v650
        %v1013 = vsel %vm652, %v1012, %v1011
        %v1014 = vperm.slane %v929, %v654
        %v1015 = vsel %vm656, %v1014, %v1013
        %v1016 = vperm.slane %v944, %v658
        %v1017 = vsel %vm660, %v1016, %v1015
        %v1018 = vperm.slane %v959, %v662
        %v1019 = vsel %vm664, %v1018, %v1017
        %v1020 = vperm.slane %v974, %v666
        %v1021 = vsel %vm668, %v1020, %v1019
        %1023 = vst [vmem:[%s259] sm:$0x1] %v1021
        %s1024 = sand.u32 %s105, 1
        %s1025 = scalar_lea.sflag [#allocation3], %s1024
        %s1026 = sand.u32 %s105, 1
        %s1027 = scalar_lea.vmem [#allocation5], %s1026
        %p1028 = scmp.lt.s32.totalorder %s24, 1
        %s1029 = scalar_select %p1028, %s24, 1
        %s1030 = smul.addr %s1029, 4
        %s1031 = scalar_lea.vmem %s4, %s1030
        %s1032 = sand.u32 %s157, 1
        %s1033 = scalar_lea.sflag [#allocation7], %s1032
        %s1034 = sand.u32 %s157, 1
        %s1035 = scalar_lea.vmem [#allocation6], %s1034
        // Predicated region
        $region37: #{det_nms_postprocess_deploy.1} parent=31 // pred_check
          %p1036 = pneg %p115
        $region38: #{det_nms_postprocess_deploy.1} parent=31 // pred_check_branch
          %1038 = sbr.rel (%p1036) target = $region40
        $region39: #{det_nms_postprocess_deploy.1} parent=31 // pred_region
          %1040 = vsyncadd %s1025, 0
          %s1041 = scalar_lea.hbm %s3, %s24
          %s1043 = sshll.u32 %s1027, 4
          %s1044 = int_to_ptr.vmem [resolvable:$true] %s1043
          %s1045 = sshll.u32 %s1041, 4
          %s1046 = int_to_ptr.hbm [resolvable:$true] %s1045
          %1048 = dma.vmem_to_hbm [thread:$0]  %s1044, 16, %s1046, %s1025
        $region40: #{det_nms_postprocess_deploy.1} parent=31 // pred_fallthru
          _
        // Predicated region
        $region41: #{det_nms_postprocess_deploy.1} parent=31 // pred_check
          %p1049 = pneg %p141
        $region42: #{det_nms_postprocess_deploy.1} parent=31 // pred_check_branch
          %1051 = sbr.rel (%p1049) target = $region44
        $region43: #{det_nms_postprocess_deploy.1} parent=31 // pred_region
          _
        $region44: #{det_nms_postprocess_deploy.1} parent=31 // pred_fallthru
          _
        // Predicated region
        $region45: #{det_nms_postprocess_deploy.1} parent=31 // pred_check
          %p1052 = pneg %p167
        $region46: #{det_nms_postprocess_deploy.1} parent=31 // pred_check_branch
          %1054 = sbr.rel (%p1052) target = $region48
        $region47: #{det_nms_postprocess_deploy.1} parent=31 // pred_region
          %1056 = vsyncadd %s1033, 0
          %s1057 = scalar_lea.hbm %s5, %s24
          %s1059 = sshll.u32 %s1035, 4
          %s1060 = int_to_ptr.vmem [resolvable:$true] %s1059
          %s1061 = sshll.u32 %s1057, 4
          %s1062 = int_to_ptr.hbm [resolvable:$true] %s1061
          %1064 = dma.vmem_to_hbm [thread:$0]  %s1060, 16, %s1062, %s1033
        $region48: #{det_nms_postprocess_deploy.1} parent=31 // pred_fallthru
          _
      $region32: #{det_nms_postprocess_deploy.1} parent=5 // pred_fallthru
        _
      %p1065 = scmp.le.s32.totalorder 2, %s19
      // Predicated region
      $region49: #{det_nms_postprocess_deploy.1} parent=5 // pred_check
        %p1066 = pneg %p1065
      $region50: #{det_nms_postprocess_deploy.1} parent=5 // pred_check_branch
        %1068 = sbr.rel (%p1066) target = $region52
      $region51: #{det_nms_postprocess_deploy.1} parent=5 // pred_region
        %s1069 = ssub.s32 %s19, 2
        // Predicated region
        $region53: #{det_nms_postprocess_deploy.1} parent=51 // pred_check
          %p1070 = pneg %p121
        $region54: #{det_nms_postprocess_deploy.1} parent=51 // pred_check_branch
          %1072 = sbr.rel (%p1070) target = $region56
        $region55: #{det_nms_postprocess_deploy.1} parent=51 // pred_region
          %s1073 = sand.u32 %s106, 1
          %s1074 = scalar_lea.sflag [#allocation3], %s1073
          %s1075 = sand.u32 %s106, 1
          %s1076 = scalar_lea.vmem [#allocation5], %s1075
          %1078 = dma.done %s1074, 16
        $region56: #{det_nms_postprocess_deploy.1} parent=51 // pred_fallthru
          _
        // Predicated region
        $region57: #{det_nms_postprocess_deploy.1} parent=51 // pred_check
          %p1079 = pneg %p147
        $region58: #{det_nms_postprocess_deploy.1} parent=51 // pred_check_branch
          %1081 = sbr.rel (%p1079) target = $region60
        $region59: #{det_nms_postprocess_deploy.1} parent=51 // pred_region
          %p1082 = scmp.lt.s32.totalorder %s25, 1
          %s1083 = scalar_select %p1082, %s25, 1
          %s1084 = smul.addr %s1083, 4
          %s1085 = scalar_lea.vmem %s4, %s1084
        $region60: #{det_nms_postprocess_deploy.1} parent=51 // pred_fallthru
          _
        // Predicated region
        $region61: #{det_nms_postprocess_deploy.1} parent=51 // pred_check
          %p1086 = pneg %p173
        $region62: #{det_nms_postprocess_deploy.1} parent=51 // pred_check_branch
          %1088 = sbr.rel (%p1086) target = $region64
        $region63: #{det_nms_postprocess_deploy.1} parent=51 // pred_region
          %s1089 = sand.u32 %s158, 1
          %s1090 = scalar_lea.sflag [#allocation7], %s1089
          %s1091 = sand.u32 %s158, 1
          %s1092 = scalar_lea.vmem [#allocation6], %s1091
          %1094 = dma.done %s1090, 16
        $region64: #{det_nms_postprocess_deploy.1} parent=51 // pred_fallthru
          _
      $region52: #{det_nms_postprocess_deploy.1} parent=5 // pred_fallthru
        _
    $region6: #{det_nms_postprocess_deploy.1} parent=1 // loop_footer
      %s23 = sadd.s32 1, %s19
    $region7: #{det_nms_postprocess_deploy.1} parent=1 // loop_footer_branch
      %18 = sbr.rel target = $region3
    $region8: #{det_nms_postprocess_deploy.1} parent=1 // loop_exit
      _
    %1095 = vsyncpa [#allocation3], 1
    %s1096 = scalar_lea.sflag [#allocation3], 1
    %1097 = vsyncpa %s1096, 1
    %1098 = vsyncpa [#allocation7], 1
    %s1099 = scalar_lea.sflag [#allocation7], 1
    %1100 = vsyncpa %s1099, 1
    %1101 = vsyncpa [#allocation4], 1
    %s1102 = scalar_lea.sflag [#allocation4], 1
    %1103 = vsyncpa %s1102, 1

</llo_original>
